<compile_context>
chip_gen: v7x
topology: tpu7x:2x2x1
jax: 0.10.0
libtpu: 0.0.40
codegen_flags: <defaults>
</compile_context>

<pallas_src>
import functools

import jax
import jax.numpy as jnp
from jax.experimental import pallas as pl
from jax.experimental.pallas import tpu as pltpu


_VMEM_INPUT_BUDGET = 4 * 1024 * 1024  # bytes per pipelined hidden-state buffer


def _pick_tiles(B, S, H, itemsize):
    """Choose (tile_b, tile_s) so the double-buffered input stays in VMEM."""
    slab = S * H * itemsize
    if slab <= _VMEM_INPUT_BUDGET:
        # Whole sequence fits comfortably: batch several rows per grid step to
        # amortize the fixed per-step overhead on small problems.
        tile_b = max(1, min(B, _VMEM_INPUT_BUDGET // max(1, slab)))
        return tile_b, S
    # Tile the sequence axis.  Keep TS a multiple of 128 so tiles stay
    # lane/sublane aligned for any generation.
    tile_s = (_VMEM_INPUT_BUDGET // (H * itemsize)) // 128 * 128
    tile_s = max(128, tile_s)
    return 1, tile_s


def _mean_pool_kernel(h_ref, m_ref, o_ref, acc_ref, cnt_ref, *, seq_len, tile_s):
    # h_ref:   (TB, TS, H)  hidden-state tile, native dtype
    # m_ref:   (TB, TS, 1)  attention-mask tile, native (int) dtype
    # o_ref:   (TB, 1, H)   f32 pooled output (resident across the S grid axis)
    # acc_ref: (TB, 1, H)   f32 running sum of mask-weighted embeddings
    # cnt_ref: (TB, 1, 1)   f32 running token count
    s = pl.program_id(1)
    n_s = pl.num_programs(1)

    @pl.when(s == 0)
    def _init():
        acc_ref[...] = jnp.zeros_like(acc_ref)
        cnt_ref[...] = jnp.zeros_like(cnt_ref)

    # Cast after the DMA: HBM traffic stays in the input's native dtype,
    # accumulation happens in f32.
    h = h_ref[...].astype(jnp.float32)
    m = m_ref[...].astype(jnp.float32)

    if seq_len % tile_s != 0:
        # Last S tile is padded with undefined data; zero it out explicitly so
        # it cannot contribute to the partial sums.
        pos = s * tile_s + jax.lax.broadcasted_iota(jnp.int32, (1, tile_s, 1), 1)
        valid = pos < seq_len
        h = jnp.where(valid, h, 0.0)
        m = jnp.where(valid, m, 0.0)

    acc_ref[...] += jnp.sum(h * m, axis=1, keepdims=True)   # (TB, 1, H)
    cnt_ref[...] += jnp.sum(m, axis=1, keepdims=True)       # (TB, 1, 1)

    @pl.when(s == n_s - 1)
    def _finalize():
        # clamp(min=1e-9) then divide -> reciprocal (EUP) + multiply (VPU).
        inv = pl.reciprocal(jnp.maximum(cnt_ref[...], 1e-9), approx=False)
        o_ref[...] = acc_ref[...] * inv


def mean_pooling(last_hidden_state, attention_mask, *, tile_b=None, tile_s=None):
    """Pallas equivalent of MeanPooling.forward.

    last_hidden_state: [B, S, H] float (any float dtype; streamed natively)
    attention_mask:    [B, S]    any numeric dtype
    returns:           [B, H]    float32
    """
    B, S, H = last_hidden_state.shape
    assert attention_mask.shape == (B, S)
    itemsize = jnp.dtype(last_hidden_state.dtype).itemsize

    auto_b, auto_s = _pick_tiles(B, S, H, itemsize)
    tile_b = auto_b if tile_b is None else tile_b
    tile_s = auto_s if tile_s is None else tile_s

    # No f32 copy of the mask in the wrapper; just a cheap reshape to [B, S, 1]
    # so the block keeps its last dim full-extent.  Cast happens in-kernel.
    mask = attention_mask.reshape(B, S, 1)

    grid = (pl.cdiv(B, tile_b), pl.cdiv(S, tile_s))
    kernel = functools.partial(_mean_pool_kernel, seq_len=S, tile_s=tile_s)

    out = pl.pallas_call(
        kernel,
        out_shape=jax.ShapeDtypeStruct((B, 1, H), jnp.float32),
        grid=grid,
        in_specs=[
            pl.BlockSpec((tile_b, tile_s, H), lambda b, s: (b, s, 0)),
            pl.BlockSpec((tile_b, tile_s, 1), lambda b, s: (b, s, 0)),
        ],
        # Output block is constant across the S axis -> resident accumulator.
        out_specs=pl.BlockSpec((tile_b, 1, H), lambda b, s: (b, 0, 0)),
        scratch_shapes=[
            pltpu.VMEM((tile_b, 1, H), jnp.float32),
            pltpu.VMEM((tile_b, 1, 1), jnp.float32),
        ],
        compiler_params=pltpu.CompilerParams(
            dimension_semantics=("parallel", "arbitrary"),
            vmem_limit_bytes=32 * 1024 * 1024,
        ),
    )(last_hidden_state, mask)
    return out.reshape(B, H)


def _reference(last_hidden_state, attention_mask):
    # Pure-JAX reference mirroring the PyTorch forward exactly.
    mask = attention_mask[..., None].astype(jnp.float32)
    mask = jnp.broadcast_to(mask, last_hidden_state.shape)
    sum_embeddings = jnp.sum(last_hidden_state.astype(jnp.float32) * mask, axis=1)
    sum_mask = jnp.maximum(jnp.sum(mask, axis=1), 1e-9)   # == torch.clamp(min=1e-9)
    return sum_embeddings / sum_mask


if __name__ == "__main__":
    key = jax.random.PRNGKey(0)

    def run_case(B, S, H, *, tile_b=None, tile_s=None, seed_offset=0):
        k1, k2 = jax.random.split(jax.random.fold_in(key, seed_offset))
        h = jax.random.normal(k1, (B, S, H), dtype=jnp.float32)
        m = (jax.random.uniform(k2, (B, S)) > 0.3).astype(jnp.int32)
        out = mean_pooling(h, m, tile_b=tile_b, tile_s=tile_s)
        jax.block_until_ready(out)
        ref = _reference(h, m)
        assert out.shape == (B, H)
        assert jnp.allclose(out, ref, atol=1e-5, rtol=1e-5), (
            f"mismatch vs reference for B={B} S={S} H={H}")

    # Small shape matching the module spec (single-step, batched rows).
    run_case(2, 8, 32)
    # Sequence-tiled path with a partial (iota-masked) last S tile.
    run_case(2, 200, 128, tile_b=1, tile_s=128, seed_offset=1)
    # Batch-tiled path where the last batch block is padded.
    run_case(3, 16, 128, tile_b=2, seed_offset=2)

    print("KERNEL_OK")
</pallas_src>

<mosaic_0001>
module attributes {stable_mosaic.version = 11 : i64} {
  func.func @_mean_pool_kernel(%arg0: i32, %arg1: i32, %arg2: memref<2x8x32xf32, #tpu.memory_space<vmem>>, %arg3: memref<2x8x1xi32, #tpu.memory_space<vmem>>, %arg4: memref<2x1x32xf32, #tpu.memory_space<vmem>>, %arg5: memref<2x1x32xf32, #tpu.memory_space<vmem>>, %arg6: memref<2x1x1xf32, #tpu.memory_space<vmem>>) attributes {dimension_semantics = [#tpu.dimension_semantics<parallel>, #tpu.dimension_semantics<arbitrary>], iteration_bounds = array<i64: 1, 1>, scalar_prefetch = 0 : i64, scratch_operands = 2 : i64, tpu.core_type = #tpu.core_type<tc>, window_params = [{transform_indices = @transform_0, window_bounds = array<i64: 2, 8, 32>}, {transform_indices = @transform_1, window_bounds = array<i64: 2, 8, 1>}, {transform_indices = @transform_2, window_bounds = array<i64: 2, 1, 32>}]} {
    %c0_i32 = arith.constant 0 : i32
    %0 = arith.cmpi eq, %arg1, %c0_i32 : i32
    %1 = arith.extui %0 : i1 to i32
    %c0_i32_0 = arith.constant 0 : i32
    %2 = arith.cmpi ne, %1, %c0_i32_0 : i32
    scf.if %2 {
      %cst_21 = arith.constant 0.000000e+00 : f32
      %21 = vector.broadcast %cst_21 : f32 to vector<2x1x32xf32>
      %c0_22 = arith.constant 0 : index
      %c0_23 = arith.constant 0 : index
      %c0_24 = arith.constant 0 : index
      %22 = vector.load %arg5[%c0_22, %c0_23, %c0_24] : memref<2x1x32xf32, #tpu.memory_space<vmem>>, vector<2x1x32xf32>
      tpu.vector_store %arg5[%c0_22, %c0_23, %c0_24], %21 {strides = array<i32>} : memref<2x1x32xf32, #tpu.memory_space<vmem>>, vector<2x1x32xf32>,
      %cst_25 = arith.constant 0.000000e+00 : f32
      %23 = vector.broadcast %cst_25 : f32 to vector<2x1x1xf32>
      %c0_26 = arith.constant 0 : index
      %c0_27 = arith.constant 0 : index
      %c0_28 = arith.constant 0 : index
      %24 = vector.load %arg6[%c0_26, %c0_27, %c0_28] : memref<2x1x1xf32, #tpu.memory_space<vmem>>, vector<2x1x1xf32>
      tpu.vector_store %arg6[%c0_26, %c0_27, %c0_28], %23 {strides = array<i32>} : memref<2x1x1xf32, #tpu.memory_space<vmem>>, vector<2x1x1xf32>,
    } else {
    }
    %c0 = arith.constant 0 : index
    %c0_1 = arith.constant 0 : index
    %c0_2 = arith.constant 0 : index
    %3 = vector.load %arg2[%c0, %c0_1, %c0_2] : memref<2x8x32xf32, #tpu.memory_space<vmem>>, vector<2x8x32xf32>
    %c0_3 = arith.constant 0 : index
    %c0_4 = arith.constant 0 : index
    %c0_5 = arith.constant 0 : index
    %4 = vector.load %arg3[%c0_3, %c0_4, %c0_5] : memref<2x8x1xi32, #tpu.memory_space<vmem>>, vector<2x8x1xi32>
    %5 = arith.sitofp %4 : vector<2x8x1xi32> to vector<2x8x1xf32>
    %c0_6 = arith.constant 0 : index
    %c0_7 = arith.constant 0 : index
    %c0_8 = arith.constant 0 : index
    %6 = vector.load %arg5[%c0_6, %c0_7, %c0_8] : memref<2x1x32xf32, #tpu.memory_space<vmem>>, vector<2x1x32xf32>
    %7 = vector.broadcast %5 : vector<2x8x1xf32> to vector<2x8x32xf32>
    %8 = arith.mulf %3, %7 : vector<2x8x32xf32>
    %cst = arith.constant dense<0.000000e+00> : vector<2x32xf32>
    %9 = vector.multi_reduction <add>, %8, %cst [1] : vector<2x8x32xf32> to vector<2x32xf32>
    %10 = vector.shape_cast %9 : vector<2x32xf32> to vector<2x1x32xf32>
    %11 = arith.addf %6, %10 : vector<2x1x32xf32>
    %c0_9 = arith.constant 0 : index
    %c0_10 = arith.constant 0 : index
    %c0_11 = arith.constant 0 : index
    %12 = vector.load %arg5[%c0_9, %c0_10, %c0_11] : memref<2x1x32xf32, #tpu.memory_space<vmem>>, vector<2x1x32xf32>
    tpu.vector_store %arg5[%c0_9, %c0_10, %c0_11], %11 {strides = array<i32>} : memref<2x1x32xf32, #tpu.memory_space<vmem>>, vector<2x1x32xf32>,
    %c0_12 = arith.constant 0 : index
    %c0_13 = arith.constant 0 : index
    %c0_14 = arith.constant 0 : index
    %13 = vector.load %arg6[%c0_12, %c0_13, %c0_14] : memref<2x1x1xf32, #tpu.memory_space<vmem>>, vector<2x1x1xf32>
    %cst_15 = arith.constant dense<0.000000e+00> : vector<2x1xf32>
    %14 = vector.multi_reduction <add>, %5, %cst_15 [1] : vector<2x8x1xf32> to vector<2x1xf32>
    %15 = vector.shape_cast %14 : vector<2x1xf32> to vector<2x1x1xf32>
    %16 = arith.addf %13, %15 : vector<2x1x1xf32>
    %c0_16 = arith.constant 0 : index
    %c0_17 = arith.constant 0 : index
    %c0_18 = arith.constant 0 : index
    %17 = vector.load %arg6[%c0_16, %c0_17, %c0_18] : memref<2x1x1xf32, #tpu.memory_space<vmem>>, vector<2x1x1xf32>
    tpu.vector_store %arg6[%c0_16, %c0_17, %c0_18], %16 {strides = array<i32>} : memref<2x1x1xf32, #tpu.memory_space<vmem>>, vector<2x1x1xf32>,
    %c0_i32_19 = arith.constant 0 : i32
    %18 = arith.cmpi eq, %arg1, %c0_i32_19 : i32
    %19 = arith.extui %18 : i1 to i32
    %c0_i32_20 = arith.constant 0 : i32
    %20 = arith.cmpi ne, %19, %c0_i32_20 : i32
    scf.if %20 {
      %c0_21 = arith.constant 0 : index
      %c0_22 = arith.constant 0 : index
      %c0_23 = arith.constant 0 : index
      %21 = vector.load %arg6[%c0_21, %c0_22, %c0_23] : memref<2x1x1xf32, #tpu.memory_space<vmem>>, vector<2x1x1xf32>
      %cst_24 = arith.constant 9.99999971E-10 : f32
      %22 = vector.broadcast %cst_24 : f32 to vector<2x1x1xf32>
      %23 = arith.maximumf %21, %22 : vector<2x1x1xf32>
      %24 = tpu.reciprocal %23 : vector<2x1x1xf32> -> vector<2x1x1xf32>
      %c0_25 = arith.constant 0 : index
      %c0_26 = arith.constant 0 : index
      %c0_27 = arith.constant 0 : index
      %25 = vector.load %arg5[%c0_25, %c0_26, %c0_27] : memref<2x1x32xf32, #tpu.memory_space<vmem>>, vector<2x1x32xf32>
      %26 = vector.broadcast %24 : vector<2x1x1xf32> to vector<2x1x32xf32>
      %27 = arith.mulf %25, %26 : vector<2x1x32xf32>
      %c0_28 = arith.constant 0 : index
      %c0_29 = arith.constant 0 : index
      %c0_30 = arith.constant 0 : index
      %28 = vector.load %arg4[%c0_28, %c0_29, %c0_30] : memref<2x1x32xf32, #tpu.memory_space<vmem>>, vector<2x1x32xf32>
      tpu.vector_store %arg4[%c0_28, %c0_29, %c0_30], %27 {strides = array<i32>} : memref<2x1x32xf32, #tpu.memory_space<vmem>>, vector<2x1x32xf32>,
    } else {
    }
    return
  }
  func.func @transform_0(%arg0: i32, %arg1: i32) -> (i32, i32, i32) {
    %c0_i32 = arith.constant 0 : i32
    %c0_i32_0 = arith.constant 0 : i32
    return %arg0, %arg1, %c0_i32 : i32, i32, i32
  }
  func.func @transform_1(%arg0: i32, %arg1: i32) -> (i32, i32, i32) {
    %c0_i32 = arith.constant 0 : i32
    %c0_i32_0 = arith.constant 0 : i32
    return %arg0, %arg1, %c0_i32 : i32, i32, i32
  }
  func.func @transform_2(%arg0: i32, %arg1: i32) -> (i32, i32, i32) {
    %c0_i32 = arith.constant 0 : i32
    %c0_i32_0 = arith.constant 0 : i32
    %c0_i32_1 = arith.constant 0 : i32
    return %arg0, %c0_i32, %c0_i32_0 : i32, i32, i32
  }
}

</mosaic_0001>

<llo_original>
// kernel: tpu_custom_call.1
$region0: #{tpu_custom_call.1}
  #allocation0 [shape = 'u32[]', space=smem, size = 0x4, offset = 0x4, fixed_abs, tag = 'smem constant byte address 0x4 - core index']
  #allocation1 [shape = 'u32[144,128]{1,0:T(1,128)}', space=vmem, size = 0x12000, scoped, tag = 'internal scratch']
  #allocation2 [shape = 'f32[2,1,32]{2,1,0:T(1,128)}', space=vmem, size = 0x400, scoped, tag = 'scratch operand']
  #allocation3 [shape = 'f32[2,1,1]{2,1,0:T(1,128)}', space=vmem, size = 0x400, scoped, tag = 'scratch operand']
  %s0 = inlined_call_operand.vmem [shape: f32[2,8,32], index: 0, kind: input, shape index: {}]
  %s1 = inlined_call_operand.vmem [shape: s32[2,8,1], index: 1, kind: input, shape index: {}]
  %s2 = inlined_call_operand.hbm [shape: f32[2,1,32], index: 2, kind: output, shape index: {}]
  %s3 = sld [smem:[#allocation0]]
  $region26: #{tpu_custom_call.1} parent=0
    _
  %s5 = ssub.s32 1, %s3
  %s6 = scalar_select 0, %s5, %s3
  $region1: #{tpu_custom_call.1} parent=0
    #allocation4 [shape = 'u8[1024]{0}', space=vmem, size = 0x400, scoped, tag = 'output window, operand 0, single buffered']
    #allocation5 [shape = 's32[1]{0}', space=sflag, size = 0x4, scoped, tag = 'scoped memory for tpu_custom_call.1']
    %7 = vsyncpa [#allocation5], 0
    // Predicated region
    $region2: #{tpu_custom_call.1} parent=1 // pred_check
      _
    $region3: #{tpu_custom_call.1} parent=1 // pred_check_branch
      %9 = sbr.rel (0) target = $region5
    $region4: #{tpu_custom_call.1} parent=1 // pred_region
      _
    $region5: #{tpu_custom_call.1} parent=1 // pred_fallthru
      _
    // Predicated region
    $region6: #{tpu_custom_call.1} parent=1 // pred_check
      _
    $region7: #{tpu_custom_call.1} parent=1 // pred_check_branch
      %11 = sbr.rel (0) target = $region9
    $region8: #{tpu_custom_call.1} parent=1 // pred_region
      _
    $region9: #{tpu_custom_call.1} parent=1 // pred_fallthru
      _
    %p12 = scmp.eq.s32.totalorder 0, 0
    // Predicated region
    $region10: #{tpu_custom_call.1} parent=1 // pred_check
      %p13 = pneg %p12
    $region11: #{tpu_custom_call.1} parent=1 // pred_check_branch
      %15 = sbr.rel (%p13) target = $region13
    $region12: #{tpu_custom_call.1} parent=1 // pred_region
      %vm16 = vcmask 253952
      %17 = vst.msk [vmem:[#allocation2] sm:$0x1] %vm16, 0.0
      %18 = vst.msk [vmem:[#allocation2 + $0x1] sm:$0x1] %vm16, 0.0
      %vm19 = vcmask 0
      %20 = vst.msk [vmem:[#allocation3] sm:$0x1] %vm19, 0.0
      %21 = vst.msk [vmem:[#allocation3 + $0x1] sm:$0x1] %vm19, 0.0
    $region13: #{tpu_custom_call.1} parent=1 // pred_fallthru
      _
    %v22 = vld [vmem:[%s0] sm:$0xff]
    %v23 = vld [vmem:[%s0 + $0x8] sm:$0xff]
    %v24 = vld [vmem:[%s1] sm:$0xff]
    %v25 = vld [vmem:[%s1 + $0x8] sm:$0xff]
    %v26 = vcvt.s32.f32 %v24
    %v27 = vcvt.s32.f32 %v25
    %v28 = vld [vmem:[#allocation2] sm:$0x1]
    %v29 = vld [vmem:[#allocation2 + $0x1] sm:$0x1]
    %31 = vset.pattern.permute.xlu0 0
    %32 = vperm.xlu0 %31, %v26
    %v33 = vpop.permute.xlu0 %32
    %36 = vset.pattern.permute.xlu0 0
    %37 = vperm.xlu0 %36, %v27
    %v38 = vpop.permute.xlu0 %37
    %v40 = vmul.f32 %v22, %v33
    %v41 = vmul.f32 %v23, %v38
    %vm42 = vcmask 261120
    %v43 = vsel %vm42, %v40, 0.0
    %v44 = vrot.slane %v43, 4
    %v45 = vadd.f32 %v43, %v44
    %v46 = vrot.slane %v45, 2
    %v47 = vadd.f32 %v45, %v46
    %v48 = vrot.slane %v47, 1
    %v49 = vadd.f32 %v47, %v48
    %v50 = vsel %vm42, %v41, 0.0
    %v51 = vrot.slane %v50, 4
    %v52 = vadd.f32 %v50, %v51
    %v53 = vrot.slane %v52, 2
    %v54 = vadd.f32 %v52, %v53
    %v55 = vrot.slane %v54, 1
    %v56 = vadd.f32 %v54, %v55
    %v57 = vadd.f32 %v28, %v49
    %v58 = vadd.f32 %v29, %v56
    %vm59 = vcmask 253952
    %60 = vst.msk [vmem:[#allocation2] sm:$0x1] %vm59, %v57
    %61 = vst.msk [vmem:[#allocation2 + $0x1] sm:$0x1] %vm59, %v58
    %v62 = vld [vmem:[#allocation3] sm:$0x1]
    %v63 = vld [vmem:[#allocation3 + $0x1] sm:$0x1]
    %vm64 = vcmask 7168
    %v65 = vsel %vm64, %v26, 0.0
    %v66 = vrot.slane %v65, 4
    %v67 = vadd.f32 %v65, %v66
    %v68 = vrot.slane %v67, 2
    %v69 = vadd.f32 %v67, %v68
    %v70 = vrot.slane %v69, 1
    %v71 = vadd.f32 %v69, %v70
    %v72 = vsel %vm64, %v27, 0.0
    %v73 = vrot.slane %v72, 4
    %v74 = vadd.f32 %v72, %v73
    %v75 = vrot.slane %v74, 2
    %v76 = vadd.f32 %v74, %v75
    %v77 = vrot.slane %v76, 1
    %v78 = vadd.f32 %v76, %v77
    %v79 = vadd.f32 %v62, %v71
    %v80 = vadd.f32 %v63, %v78
    %vm81 = vcmask 0
    %82 = vst.msk [vmem:[#allocation3] sm:$0x1] %vm81, %v79
    %83 = vst.msk [vmem:[#allocation3 + $0x1] sm:$0x1] %vm81, %v80
    // Predicated region
    $region14: #{tpu_custom_call.1} parent=1 // pred_check
      %p84 = pneg %p12
    $region15: #{tpu_custom_call.1} parent=1 // pred_check_branch
      %86 = sbr.rel (%p84) target = $region17
    $region16: #{tpu_custom_call.1} parent=1 // pred_region
      %v87 = vld [vmem:[#allocation3] sm:$0x1]
      %v88 = vld [vmem:[#allocation3 + $0x1] sm:$0x1]
      %v89 = vmax.f32 %v87, 1e-09
      %v90 = vmax.f32 %v88, 1e-09
      %v91 = vrcp.pop %v89
      %v92 = vrcp.pop %v90
      %v93 = vld [vmem:[#allocation2] sm:$0x1]
      %v94 = vld [vmem:[#allocation2 + $0x1] sm:$0x1]
      %96 = vset.pattern.permute.xlu0 0
      %97 = vperm.xlu0 %96, %v91
      %v98 = vpop.permute.xlu0 %97
      %v100 = vlaneseq
      %v101 = vshrl.u32 %v100, 7
      %v102 = vsub.s32 0, %v101
      %v103 = vrot.slane %v98, %v102
      %105 = vset.pattern.permute.xlu0 0
      %106 = vperm.xlu0 %105, %v92
      %v107 = vpop.permute.xlu0 %106
      %v109 = vlaneseq
      %v110 = vshrl.u32 %v109, 7
      %v111 = vsub.s32 0, %v110
      %v112 = vrot.slane %v107, %v111
      %v113 = vmul.f32 %v93, %v103
      %v114 = vmul.f32 %v94, %v112
      %115 = vst.msk [vmem:[#allocation4] sm:$0x1] %vm59, %v113
      %116 = vst.msk [vmem:[#allocation4 + $0x1] sm:$0x1] %vm59, %v114
    $region17: #{tpu_custom_call.1} parent=1 // pred_fallthru
      _
    // Predicated region
    $region18: #{tpu_custom_call.1} parent=1 // pred_check
      _
    $region19: #{tpu_custom_call.1} parent=1 // pred_check_branch
      %118 = sbr.rel (0) target = $region21
    $region20: #{tpu_custom_call.1} parent=1 // pred_region
      %s120 = ssub.s32 32, 32
      %121 = vsyncadd [#allocation5], %s120
      %s122 = sshll.u32 [#allocation4], 4
      %s123 = int_to_ptr.vmem [resolvable:$true] %s122
      %128 = dma.vmem_to_hbm [thread:$0]  %s123, 32, %s2, [#allocation5], 16, 16, 1
    $region21: #{tpu_custom_call.1} parent=1 // pred_fallthru
      _
    // Predicated region
    $region22: #{tpu_custom_call.1} parent=1 // pred_check
      _
    $region23: #{tpu_custom_call.1} parent=1 // pred_check_branch
      %130 = sbr.rel (0) target = $region25
    $region24: #{tpu_custom_call.1} parent=1 // pred_region
      %131 = dma.done [#allocation5], 32
    $region25: #{tpu_custom_call.1} parent=1 // pred_fallthru
      _
    %132 = vsyncpa [#allocation5], 1

</llo_original>
